<compile_context>
chip_gen: v7x
topology: tpu7x:2x2x1
jax: 0.10.0
libtpu: 0.0.40
codegen_flags: <defaults>
</compile_context>

<pallas_src>
import functools

import jax
import jax.numpy as jnp
from jax import lax
from jax.experimental import pallas as pl
from jax.experimental.pallas import tpu as pltpu

LANES = 128                       # last dim -> 128-lane axis
MAX_BLOCK_ROWS = 8192             # 4 MiB per f32 input block
VMEM_LIMIT_BYTES = 48 * 1024 * 1024  # explicit scoped-VMEM limit (safe on v5e..v7x)


def _core_split_config():
    """Return (num_core_splits, dimension_semantics) for the current chip."""
    core_parallel = getattr(pltpu, "CORE_PARALLEL", None)
    try:
        kind = jax.devices()[0].device_kind.lower()
    except Exception:  # pragma: no cover - defensive
        kind = ""
    if core_parallel is not None and "v7" in kind:
        # v7x has 2 TensorCores per chip; CORE_PARALLEL genuinely shards the
        # leading grid axis across them (plain "parallel" does not).
        return 2, (core_parallel, pltpu.ARBITRARY)
    # Single-TensorCore chips (v5e/v6e): a core split is pure overhead.
    return 1, ("arbitrary", "arbitrary")


def _sse_kernel(x_ref, t_ref, o_ref, *,
                block_rows, blocks_per_core, total_rows, need_mask):
    c = pl.program_id(0)   # core-split index
    i = pl.program_id(1)   # reduction step ("arbitrary")

    @pl.when(i == 0)
    def _():
        o_ref[...] = jnp.zeros_like(o_ref)

    d = x_ref[...].astype(jnp.float32) - t_ref[...].astype(jnp.float32)
    sq = d * d

    def fold(vals):
        # (block_rows, 128) -> (8, 128) with pure VPU elementwise adds; the
        # reshape groups whole (8, 128) native tiles so it is layout-trivial.
        return jnp.sum(vals.reshape(block_rows // 8, 8, LANES), axis=0)

    if need_mask:
        row0 = (c * blocks_per_core + i) * block_rows
        is_tail = row0 + block_rows > total_rows

        @pl.when(is_tail)
        def _():
            # Ragged last block and fully clamped out-of-range blocks: zero
            # every row at or past the logical end before accumulating.
            row_ids = row0 + lax.broadcasted_iota(jnp.int32, sq.shape, 0)
            o_ref[0] += fold(jnp.where(row_ids < total_rows, sq, 0.0))

        @pl.when(jnp.logical_not(is_tail))
        def _():
            # Common path: no iota/cmp/select, just sub/mul/accumulate.
            o_ref[0] += fold(sq)
    else:
        o_ref[0] += fold(sq)


def sum_squared_error_loss(x, target):
    """Pallas TPU implementation of F.mse_loss(x, target, 'mean') / 2."""
    assert x.shape == target.shape, "input/target shape mismatch"
    n_elems = int(x.size)

    xf = x.reshape(-1)
    tf = target.reshape(-1)

    # Lane-aligned body + tiny ragged tail (handled in plain JAX; no jnp.pad
    # full-copy of the inputs).
    n_aligned = (n_elems // LANES) * LANES
    rows = n_aligned // LANES

    if n_aligned != n_elems:
        xt = xf[n_aligned:].astype(jnp.float32)
        tt = tf[n_aligned:].astype(jnp.float32)
        tail_sum = jnp.sum((xt - tt) ** 2)
    else:
        tail_sum = jnp.float32(0.0)

    if rows == 0:
        # Fewer than 128 elements: pure-JAX path.
        return tail_sum / (2.0 * n_elems)

    x2d = xf[:n_aligned].reshape(rows, LANES)
    t2d = tf[:n_aligned].reshape(rows, LANES)

    num_splits, dim_semantics = _core_split_config()

    # Largest block that fits the budget, clamped (multiple of 8 sublanes).
    block_rows = min(MAX_BLOCK_ROWS, ((rows + 7) // 8) * 8)
    n_blocks = pl.cdiv(rows, block_rows)
    blocks_per_core = pl.cdiv(n_blocks, num_splits)
    covered_rows = num_splits * blocks_per_core * block_rows
    need_mask = covered_rows != rows

    # Clamp the block index so every DMA stays in bounds; the in-kernel row
    # mask zeroes out clamped / ragged blocks (need_mask is guaranteed True
    # whenever any block extends past the logical end).
    def in_index_map(c, i):
        return (jnp.minimum(c * blocks_per_core + i, n_blocks - 1), 0)

    kernel = functools.partial(
        _sse_kernel,
        block_rows=block_rows,
        blocks_per_core=blocks_per_core,
        total_rows=rows,
        need_mask=need_mask,
    )

    itemsize = jnp.dtype(x.dtype).itemsize
    cost = pl.CostEstimate(
        flops=3 * n_aligned,             # sub, mul, add per element
        transcendentals=0,
        bytes_accessed=2 * n_aligned * itemsize,
    )

    partials = pl.pallas_call(
        kernel,
        out_shape=jax.ShapeDtypeStruct((num_splits, 8, LANES), jnp.float32),
        grid=(num_splits, blocks_per_core),
        in_specs=[
            pl.BlockSpec((block_rows, LANES), in_index_map),
            pl.BlockSpec((block_rows, LANES), in_index_map),
        ],
        # Lane-dense (8, 128) partial accumulator per core split; the output
        # block stays resident across the reduction axis (accumulator pattern).
        out_specs=pl.BlockSpec((1, 8, LANES), lambda c, i: (c, 0, 0)),
        compiler_params=pltpu.CompilerParams(
            dimension_semantics=dim_semantics,
            vmem_limit_bytes=VMEM_LIMIT_BYTES,
        ),
        cost_estimate=cost,
    )(x2d, t2d)

    # Final cross-lane reduce + tail + mean over original N elements, halved.
    return (jnp.sum(partials) + tail_sum) / (2.0 * n_elems)


if __name__ == "__main__":
    key = jax.random.PRNGKey(0)
    k1, k2, k3, k4 = jax.random.split(key, 4)

    # Shapes consistent with a YOLO-style loss input (NCHW tensors).
    x = jax.random.normal(k1, (2, 4, 16, 16), dtype=jnp.float32)
    t = jax.random.normal(k2, (2, 4, 16, 16), dtype=jnp.float32)

    loss = sum_squared_error_loss(x, t)
    jax.block_until_ready(loss)
    ref = jnp.mean((x - t) ** 2) / 2.0
    assert jnp.allclose(loss, ref, rtol=1e-5, atol=1e-6), (loss, ref)

    # Ragged case: exercises the in-kernel tail row mask + wrapper tail sum.
    xr = jax.random.normal(k3, (2, 5, 129), dtype=jnp.float32)
    tr = jax.random.normal(k4, (2, 5, 129), dtype=jnp.float32)
    loss_r = sum_squared_error_loss(xr, tr)
    jax.block_until_ready(loss_r)
    ref_r = jnp.mean((xr - tr) ** 2) / 2.0
    assert jnp.allclose(loss_r, ref_r, rtol=1e-5, atol=1e-6), (loss_r, ref_r)

    print("KERNEL_OK")
</pallas_src>

<mosaic_0001>
module attributes {stable_mosaic.version = 11 : i64} {
  func.func @_sse_kernel(%arg0: i32, %arg1: i32, %arg2: memref<16x128xf32, #tpu.memory_space<vmem>>, %arg3: memref<16x128xf32, #tpu.memory_space<vmem>>, %arg4: memref<1x8x128xf32, #tpu.memory_space<vmem>>) attributes {dimension_semantics = [#tpu.dimension_semantics<arbitrary>, #tpu.dimension_semantics<arbitrary>], iteration_bounds = array<i64: 1, 1>, scalar_prefetch = 0 : i64, scratch_operands = 0 : i64, tpu.core_type = #tpu.core_type<tc>, window_params = [{transform_indices = @transform_0, window_bounds = array<i64: 16, 128>}, {transform_indices = @transform_1, window_bounds = array<i64: 16, 128>}, {transform_indices = @transform_2, window_bounds = array<i64: 1, 8, 128>}]} {
    %c0_i32 = arith.constant 0 : i32
    %0 = arith.cmpi eq, %arg1, %c0_i32 : i32
    %1 = arith.extui %0 : i1 to i32
    %c0_i32_0 = arith.constant 0 : i32
    %2 = arith.cmpi ne, %1, %c0_i32_0 : i32
    scf.if %2 {
      %cst_10 = arith.constant 0.000000e+00 : f32
      %15 = vector.broadcast %cst_10 : f32 to vector<1x8x128xf32>
      %c0_11 = arith.constant 0 : index
      %c0_12 = arith.constant 0 : index
      %c0_13 = arith.constant 0 : index
      %16 = vector.load %arg4[%c0_11, %c0_12, %c0_13] : memref<1x8x128xf32, #tpu.memory_space<vmem>>, vector<1x8x128xf32>
      tpu.vector_store %arg4[%c0_11, %c0_12, %c0_13], %15 {strides = array<i32>} : memref<1x8x128xf32, #tpu.memory_space<vmem>>, vector<1x8x128xf32>,
    } else {
    }
    %c0 = arith.constant 0 : index
    %c0_1 = arith.constant 0 : index
    %3 = vector.load %arg2[%c0, %c0_1] : memref<16x128xf32, #tpu.memory_space<vmem>>, vector<16x128xf32>
    %c0_2 = arith.constant 0 : index
    %c0_3 = arith.constant 0 : index
    %4 = vector.load %arg3[%c0_2, %c0_3] : memref<16x128xf32, #tpu.memory_space<vmem>>, vector<16x128xf32>
    %5 = arith.subf %3, %4 : vector<16x128xf32>
    %6 = arith.mulf %5, %5 : vector<16x128xf32>
    %c0_4 = arith.constant 0 : index
    %c0_5 = arith.constant 0 : index
    %c0_6 = arith.constant 0 : index
    %7 = vector.load %arg4[%c0_4, %c0_5, %c0_6] : memref<1x8x128xf32, #tpu.memory_space<vmem>>, vector<1x8x128xf32>
    %8 = vector.shape_cast %7 : vector<1x8x128xf32> to vector<8x128xf32>
    %9 = vector.shape_cast %6 : vector<16x128xf32> to vector<2x8x128xf32>
    %cst = arith.constant dense<0.000000e+00> : vector<8x128xf32>
    %10 = vector.multi_reduction <add>, %9, %cst [0] : vector<2x8x128xf32> to vector<8x128xf32>
    %11 = arith.addf %8, %10 : vector<8x128xf32>
    %c0_7 = arith.constant 0 : index
    %c0_8 = arith.constant 0 : index
    %c0_9 = arith.constant 0 : index
    %12 = vector.load %arg4[%c0_7, %c0_8, %c0_9] : memref<1x8x128xf32, #tpu.memory_space<vmem>>, vector<1x8x128xf32>
    %13 = vector.shape_cast %12 : vector<1x8x128xf32> to vector<8x128xf32>
    %14 = vector.shape_cast %11 : vector<8x128xf32> to vector<1x8x128xf32>
    tpu.vector_store %arg4[%c0_7, %c0_8, %c0_9], %14 {strides = array<i32>} : memref<1x8x128xf32, #tpu.memory_space<vmem>>, vector<1x8x128xf32>,
    return
  }
  func.func @transform_0(%arg0: i32, %arg1: i32) -> (i32, i32) {
    %c1_i32 = arith.constant 1 : i32
    %0 = arith.muli %arg0, %c1_i32 : i32
    %1 = arith.addi %0, %arg1 : i32
    %c0_i32 = arith.constant 0 : i32
    %2 = arith.minsi %1, %c0_i32 : i32
    %c0_i32_0 = arith.constant 0 : i32
    %c0_i32_1 = arith.constant 0 : i32
    return %2, %c0_i32_0 : i32, i32
  }
  func.func @transform_1(%arg0: i32, %arg1: i32) -> (i32, i32) {
    %c1_i32 = arith.constant 1 : i32
    %0 = arith.muli %arg0, %c1_i32 : i32
    %1 = arith.addi %0, %arg1 : i32
    %c0_i32 = arith.constant 0 : i32
    %2 = arith.minsi %1, %c0_i32 : i32
    %c0_i32_0 = arith.constant 0 : i32
    %c0_i32_1 = arith.constant 0 : i32
    return %2, %c0_i32_0 : i32, i32
  }
  func.func @transform_2(%arg0: i32, %arg1: i32) -> (i32, i32, i32) {
    %c0_i32 = arith.constant 0 : i32
    %c0_i32_0 = arith.constant 0 : i32
    %c0_i32_1 = arith.constant 0 : i32
    return %arg0, %c0_i32, %c0_i32_0 : i32, i32, i32
  }
}

</mosaic_0001>

<llo_original>
// kernel: tpu_custom_call.1
$region0: #{tpu_custom_call.1}
  #allocation0 [shape = 'u32[]', space=smem, size = 0x4, offset = 0x4, fixed_abs, tag = 'smem constant byte address 0x4 - core index']
  #allocation1 [shape = 'u32[144,128]{1,0:T(1,128)}', space=vmem, size = 0x12000, scoped, tag = 'internal scratch']
  %s0 = inlined_call_operand.hbm [shape: f32[16,128], index: 0, kind: input, shape index: {}]
  %s1 = inlined_call_operand.hbm [shape: f32[16,128], index: 1, kind: input, shape index: {}]
  %s2 = inlined_call_operand.hbm [shape: f32[1,8,128], index: 2, kind: output, shape index: {}]
  %s3 = sld [smem:[#allocation0]]
  $region30: #{tpu_custom_call.1} parent=0
    _
  %s5 = ssub.s32 1, %s3
  %s6 = scalar_select 0, %s5, %s3
  $region1: #{tpu_custom_call.1} parent=0
    #allocation2 [shape = 'u8[8192]{0}', space=vmem, size = 0x2000, scoped, tag = 'input window, operand 0, single buffered']
    #allocation3 [shape = 's32[1]{0}', space=sflag, size = 0x4, scoped, tag = 'scoped memory for tpu_custom_call.1']
    #allocation4 [shape = 's32[1]{0}', space=sflag, size = 0x4, scoped, tag = 'scoped memory for tpu_custom_call.1']
    #allocation5 [shape = 'u8[8192]{0}', space=vmem, size = 0x2000, scoped, tag = 'input window, operand 1, single buffered']
    #allocation6 [shape = 's32[1]{0}', space=sflag, size = 0x4, scoped, tag = 'scoped memory for tpu_custom_call.1']
    #allocation7 [shape = 'u8[4096]{0}', space=vmem, size = 0x1000, scoped, tag = 'output window, operand 0, single buffered']
    %7 = vsyncpa [#allocation3], 0
    %8 = vsyncpa [#allocation6], 0
    %9 = vsyncpa [#allocation4], 0
    // Predicated region
    $region2: #{tpu_custom_call.1} parent=1 // pred_check
      _
    $region3: #{tpu_custom_call.1} parent=1 // pred_check_branch
      %11 = sbr.rel (0) target = $region5
    $region4: #{tpu_custom_call.1} parent=1 // pred_region
      %s12 = sadd.s32 0, 0
      %p13 = scmp.lt.s32.totalorder %s12, 0
      %s14 = scalar_select %p13, %s12, 0
      %s15 = smul.u32 2, %s14
      %s17 = ssub.s32 256, 256
      %18 = vsyncadd [#allocation3], %s17
      %s19 = smul.addr %s15, 128
      %s20 = scalar_lea.hbm %s0, %s19
      %s21 = sshll.u32 [#allocation2], 4
      %s22 = int_to_ptr.vmem [resolvable:$true] %s21
      %27 = dma.hbm_to_vmem [thread:$0]  %s20, 256, %s22, [#allocation3], 128, 128, 8
    $region5: #{tpu_custom_call.1} parent=1 // pred_fallthru
      _
    // Predicated region
    $region6: #{tpu_custom_call.1} parent=1 // pred_check
      _
    $region7: #{tpu_custom_call.1} parent=1 // pred_check_branch
      %29 = sbr.rel (0) target = $region9
    $region8: #{tpu_custom_call.1} parent=1 // pred_region
      %s30 = sadd.s32 0, 0
      %p31 = scmp.lt.s32.totalorder %s30, 0
      %s32 = scalar_select %p31, %s30, 0
      %s33 = smul.u32 2, %s32
      %s35 = ssub.s32 256, 256
      %36 = vsyncadd [#allocation6], %s35
      %s37 = smul.addr %s33, 128
      %s38 = scalar_lea.hbm %s1, %s37
      %s39 = sshll.u32 [#allocation5], 4
      %s40 = int_to_ptr.vmem [resolvable:$true] %s39
      %45 = dma.hbm_to_vmem [thread:$0]  %s38, 256, %s40, [#allocation6], 128, 128, 8
    $region9: #{tpu_custom_call.1} parent=1 // pred_fallthru
      _
    // Predicated region
    $region10: #{tpu_custom_call.1} parent=1 // pred_check
      _
    $region11: #{tpu_custom_call.1} parent=1 // pred_check_branch
      %47 = sbr.rel (0) target = $region13
    $region12: #{tpu_custom_call.1} parent=1 // pred_region
      %48 = dma.done [#allocation3], 256
    $region13: #{tpu_custom_call.1} parent=1 // pred_fallthru
      _
    // Predicated region
    $region14: #{tpu_custom_call.1} parent=1 // pred_check
      _
    $region15: #{tpu_custom_call.1} parent=1 // pred_check_branch
      %50 = sbr.rel (0) target = $region17
    $region16: #{tpu_custom_call.1} parent=1 // pred_region
      %51 = dma.done [#allocation6], 256
    $region17: #{tpu_custom_call.1} parent=1 // pred_fallthru
      _
    %s52 = sadd.s32 0, 0
    %p53 = scmp.lt.s32.totalorder %s52, 0
    %s54 = scalar_select %p53, %s52, 0
    %s55 = smul.u32 2, %s54
    %s56 = sadd.s32 0, 0
    %p57 = scmp.lt.s32.totalorder %s56, 0
    %s58 = scalar_select %p57, %s56, 0
    %s59 = smul.u32 2, %s58
    %p60 = scmp.eq.s32.totalorder 0, 0
    // Predicated region
    $region18: #{tpu_custom_call.1} parent=1 // pred_check
      %p61 = pneg %p60
    $region19: #{tpu_custom_call.1} parent=1 // pred_check_branch
      %63 = sbr.rel (%p61) target = $region21
    $region20: #{tpu_custom_call.1} parent=1 // pred_region
      %64 = vst [vmem:[#allocation7] sm:$0xff] 0.0
    $region21: #{tpu_custom_call.1} parent=1 // pred_fallthru
      _
    %v65 = vld [vmem:[#allocation2] sm:$0xff]
    %v66 = vld [vmem:[#allocation2 + $0x8] sm:$0xff]
    %v67 = vld [vmem:[#allocation5] sm:$0xff]
    %v68 = vld [vmem:[#allocation5 + $0x8] sm:$0xff]
    %v69 = vsub.f32 %v65, %v67
    %v70 = vsub.f32 %v66, %v68
    %v71 = vmul.f32 %v69, %v69
    %v72 = vmul.f32 %v70, %v70
    %v73 = vld [vmem:[#allocation7] sm:$0xff]
    %v74 = vadd.f32 %v71, %v72
    %v75 = vadd.f32 %v73, %v74
    %76 = vst [vmem:[#allocation7] sm:$0xff] %v75
    // Predicated region
    $region22: #{tpu_custom_call.1} parent=1 // pred_check
      _
    $region23: #{tpu_custom_call.1} parent=1 // pred_check_branch
      %78 = sbr.rel (0) target = $region25
    $region24: #{tpu_custom_call.1} parent=1 // pred_region
      %s80 = ssub.s32 128, 128
      %81 = vsyncadd [#allocation4], %s80
      %s83 = sshll.u32 [#allocation7], 4
      %s84 = int_to_ptr.vmem [resolvable:$true] %s83
      %86 = dma.vmem_to_hbm [thread:$0]  %s84, 128, %s2, [#allocation4]
    $region25: #{tpu_custom_call.1} parent=1 // pred_fallthru
      _
    // Predicated region
    $region26: #{tpu_custom_call.1} parent=1 // pred_check
      _
    $region27: #{tpu_custom_call.1} parent=1 // pred_check_branch
      %88 = sbr.rel (0) target = $region29
    $region28: #{tpu_custom_call.1} parent=1 // pred_region
      %89 = dma.done [#allocation4], 128
    $region29: #{tpu_custom_call.1} parent=1 // pred_fallthru
      _
    %90 = vsyncpa [#allocation3], 1
    %91 = vsyncpa [#allocation6], 1
    %92 = vsyncpa [#allocation4], 1

</llo_original>
